<compile_context>
chip_gen: v7x
topology: tpu7x:2x2x1
jax: 0.10.0
libtpu: 0.0.40
codegen_flags: <defaults>
</compile_context>

<pallas_src>
import math

import jax
import jax.numpy as jnp
from jax import lax
from jax.experimental import pallas as pl
from jax.experimental.pallas import tpu as pltpu


LANE = 128   # TPU lane width: pad feature/key dims to this
TQ = 128     # query/row block size (grid axis, shardable across TensorCores)
# TODO(synk): bump TQ (and N-dim padding) to 256 on v6e/v7x for large S; 128
# already matches the v5e MXU and is safe everywhere for the toy shapes here.


def _round_up(n, m):
    return (n + m - 1) // m * m


def _const_spec(shape):
    """Constant-index input: VMEM-resident across grid steps, single buffer."""
    return pl.BlockSpec(shape, lambda i: (0,) * len(shape),
                        pipeline_mode=pl.Buffered(1))


def _vmem_budget(buffer_bytes):
    """Scoped-VMEM request with headroom, clamped to a v7x-safe range."""
    need = int(buffer_bytes * 1.5) + (4 << 20)
    return max(32 << 20, min(need, 64 << 20))


# --------------------------------------------------------------------------
# Pass 1: Q/K/V projections, tiled over rows (computed exactly once).
# --------------------------------------------------------------------------
def qkv_proj_kernel(x_ref, wq_ref, bq_ref, wk_ref, bk_ref, wv_ref, bv_ref,
                    q_ref, k_ref, v_ref):
    x = x_ref[...]                                               # [TQ, Dp] bf16
    q = jnp.dot(x, wq_ref[...], preferred_element_type=jnp.float32) + bq_ref[...]
    q_ref[...] = q.astype(jnp.bfloat16)
    k = jnp.dot(x, wk_ref[...], preferred_element_type=jnp.float32) + bk_ref[...]
    k_ref[...] = k.astype(jnp.bfloat16)
    v = jnp.dot(x, wv_ref[...], preferred_element_type=jnp.float32) + bv_ref[...]
    v_ref[...] = v.astype(jnp.bfloat16)


# --------------------------------------------------------------------------
# Pass 2: attention + FFN per query block. K/V are precomputed bf16 inputs.
# --------------------------------------------------------------------------
def attn_ffn_kernel(q_ref, k_ref, v_ref, x_ref, mask_ref,
                    w1_ref, b1_ref, w2_ref, b2_ref,
                    out_ref, attn_ref):
    # scores = Q K^T as an NT matmul (no materialized K transpose).
    # The 1/sqrt(d_internal) softmax scale is folded into Wq/bq in the wrapper.
    scores = lax.dot_general(
        q_ref[...], k_ref[...],
        dimension_numbers=(((1,), (1,)), ((), ())),
        preferred_element_type=jnp.float32)                      # [TQ, Sp]
    scores = scores + mask_ref[...]                              # -1e30 on padded keys

    # Numerically-stable softmax; approx reciprocal runs on the EUP slot.
    m = jnp.max(scores, axis=-1, keepdims=True)
    e = jnp.exp(scores - m)
    attn = e * pl.reciprocal(jnp.sum(e, axis=-1, keepdims=True), approx=True)
    attn = attn.astype(jnp.bfloat16)
    attn_ref[...] = attn

    x_q = x_ref[...].astype(jnp.float32)                         # [TQ, Dp]
    mp = jnp.dot(attn, v_ref[...],
                 preferred_element_type=jnp.float32) + x_q       # residual 1

    h = jnp.dot(mp.astype(jnp.bfloat16), w1_ref[...],
                preferred_element_type=jnp.float32) + b1_ref[...]
    h = jnp.maximum(h, 0.0)                                      # ReLU
    ffn = jnp.dot(h.astype(jnp.bfloat16), w2_ref[...],
                  preferred_element_type=jnp.float32) + b2_ref[...]
    out_ref[...] = ffn + mp                                      # residual 2


# --------------------------------------------------------------------------
# Host-side wrapper
# --------------------------------------------------------------------------
def _pad_mat(a, rows, cols, dtype):
    out = jnp.zeros((rows, cols), dtype)
    return out.at[:a.shape[0], :a.shape[1]].set(a.astype(dtype))


def _pad_bias(b, cols):
    out = jnp.zeros((1, cols), jnp.float32)
    return out.at[0, :b.shape[0]].set(b.astype(jnp.float32))


def make_params(key, vocab_size, num_positions, d_model, d_internal, d_ff):
    """Deterministic synthetic parameters (shapes match the nn.Module __init__)."""
    ks = jax.random.split(key, 12)
    n = lambda k, shape, s=0.02: (s * jax.random.normal(k, shape)).astype(jnp.float32)
    return {
        "word_embedding": n(ks[0], (vocab_size, d_model), 1.0),
        "pos_embedding":  n(ks[1], (num_positions, d_model), 1.0),
        # stored already transposed: (in, out)
        "wq": n(ks[2], (d_model, d_internal)), "bq": n(ks[3], (d_internal,)),
        "wk": n(ks[4], (d_model, d_internal)), "bk": n(ks[5], (d_internal,)),
        "wv": n(ks[6], (d_model, d_model)),    "bv": n(ks[7], (d_model,)),
        "w1": n(ks[8], (d_model, d_ff)),       "b1": n(ks[9], (d_ff,)),
        "w2": n(ks[10], (d_ff, d_model)),      "b2": n(ks[11], (d_model,)),
    }


def transformer_forward(indices, params, d_internal):
    # Embedding gather + positional add (tiny; kept in XLA).
    # TODO(synk): fuse the gather via PrefetchScalarGridSpec(num_scalar_prefetch=1)
    # + an SMEM index table once sequence lengths justify it.
    emb = params["word_embedding"][indices]                  # [S, D]
    S, d_model = emb.shape
    pos = params["pos_embedding"][:S]
    x = (emb + (emb + pos)).astype(jnp.float32)              # x = x + pos_enc(x)

    d_ff = params["w1"].shape[1]
    Dp = _round_up(d_model, LANE)
    Dip = _round_up(d_internal, LANE)
    Dffp = _round_up(d_ff, LANE)
    Sp = _round_up(max(S, TQ), TQ)
    nq = Sp // TQ

    scale = 1.0 / math.sqrt(d_internal)
    x_p = _pad_mat(x, Sp, Dp, jnp.bfloat16)
    wq_p = _pad_mat(params["wq"] * scale, Dp, Dip, jnp.bfloat16)   # scale folded
    bq_p = _pad_bias(params["bq"] * scale, Dip)
    wk_p = _pad_mat(params["wk"], Dp, Dip, jnp.bfloat16)
    bk_p = _pad_bias(params["bk"], Dip)
    wv_p = _pad_mat(params["wv"], Dp, Dp, jnp.bfloat16)
    bv_p = _pad_bias(params["bv"], Dp)
    w1_p = _pad_mat(params["w1"], Dp, Dffp, jnp.bfloat16)
    b1_p = _pad_bias(params["b1"], Dffp)
    w2_p = _pad_mat(params["w2"], Dffp, Dp, jnp.bfloat16)
    b2_p = _pad_bias(params["b2"], Dp)

    # Additive key mask: 0 for valid keys, -1e30 for padded key columns.
    key_mask = jnp.where(jnp.arange(Sp)[None, :] < S,
                         jnp.float32(0.0), jnp.float32(-1e30))   # [1, Sp]

    # ---------------- pass 1: projections (Q, K, V computed once) -----------
    proj_buffers = (
        2 * (TQ * Dp * 2)                                   # x block (2x buffered)
        + (2 * Dp * Dip + Dp * Dp) * 2                      # wq, wk, wv (1x, bf16)
        + (2 * Dip + Dp) * 4                                # biases (1x, f32)
        + 2 * (2 * TQ * Dip * 2 + TQ * Dp * 2))             # q, k, v out blocks (2x)
    q_bf, k_bf, v_bf = pl.pallas_call(
        qkv_proj_kernel,
        grid=(nq,),
        in_specs=[
            pl.BlockSpec((TQ, Dp), lambda i: (i, 0)),       # x row block
            _const_spec((Dp, Dip)), _const_spec((1, Dip)),  # wq, bq (pre-scaled)
            _const_spec((Dp, Dip)), _const_spec((1, Dip)),  # wk, bk
            _const_spec((Dp, Dp)),  _const_spec((1, Dp)),   # wv, bv
        ],
        out_specs=(
            pl.BlockSpec((TQ, Dip), lambda i: (i, 0)),
            pl.BlockSpec((TQ, Dip), lambda i: (i, 0)),
            pl.BlockSpec((TQ, Dp),  lambda i: (i, 0)),
        ),
        out_shape=(
            jax.ShapeDtypeStruct((Sp, Dip), jnp.bfloat16),
            jax.ShapeDtypeStruct((Sp, Dip), jnp.bfloat16),
            jax.ShapeDtypeStruct((Sp, Dp),  jnp.bfloat16),
        ),
        compiler_params=pltpu.CompilerParams(
            dimension_semantics=("parallel",),
            vmem_limit_bytes=_vmem_budget(proj_buffers)),
        cost_estimate=pl.CostEstimate(
            flops=int(2 * Sp * Dp * (2 * Dip + Dp)),
            transcendentals=0,
            bytes_accessed=int(
                Sp * Dp * 2                                  # x read once
                + (2 * Dp * Dip + Dp * Dp) * 2 + (2 * Dip + Dp) * 4
                + Sp * (2 * Dip + Dp) * 2)),                 # q/k/v written once
    )(x_p, wq_p, bq_p, wk_p, bk_p, wv_p, bv_p)

    # ---------------- pass 2: attention + FFN per query block ---------------
    attn_buffers = (
        2 * (TQ * Dip * 2 + TQ * Dp * 2)                    # q, x blocks (2x)
        + Sp * Dip * 2 + Sp * Dp * 2 + Sp * 4               # K, V, mask (1x)
        + (Dp * Dffp + Dffp * Dp) * 2 + (Dffp + Dp) * 4     # FFN weights/biases (1x)
        + 2 * (TQ * Dp * 4 + TQ * Sp * 2)                   # out, attn blocks (2x)
        + 2 * TQ * Sp * 4 + TQ * Dffp * 4 + 2 * TQ * Dp * 4)  # f32 temporaries
    out_p, attn_p = pl.pallas_call(
        attn_ffn_kernel,
        grid=(nq,),
        in_specs=[
            pl.BlockSpec((TQ, Dip), lambda i: (i, 0)),      # Q block
            _const_spec((Sp, Dip)),                         # K (full, resident)
            _const_spec((Sp, Dp)),                          # V (full, resident)
            pl.BlockSpec((TQ, Dp), lambda i: (i, 0)),       # x block (residual)
            _const_spec((1, Sp)),                           # additive key mask
            _const_spec((Dp, Dffp)), _const_spec((1, Dffp)),  # w1, b1
            _const_spec((Dffp, Dp)), _const_spec((1, Dp)),    # w2, b2
        ],
        out_specs=(
            pl.BlockSpec((TQ, Dp), lambda i: (i, 0)),
            pl.BlockSpec((TQ, Sp), lambda i: (i, 0)),
        ),
        out_shape=(
            jax.ShapeDtypeStruct((Sp, Dp), jnp.float32),
            jax.ShapeDtypeStruct((Sp, Sp), jnp.bfloat16),   # halves O(S^2) store
        ),
        compiler_params=pltpu.CompilerParams(
            dimension_semantics=("parallel",),
            vmem_limit_bytes=_vmem_budget(attn_buffers)),
        cost_estimate=pl.CostEstimate(
            flops=int(2 * (Sp * Sp * Dip + Sp * Sp * Dp
                           + Sp * Dp * Dffp + Sp * Dffp * Dp)),
            transcendentals=int(Sp * Sp + Sp),
            bytes_accessed=int(
                Sp * Dip * 2 + Sp * Dp * 2                  # K, V read once
                + Sp * Dip * 2 + Sp * Dp * 2 + Sp * 4       # Q, x, mask
                + (Dp * Dffp + Dffp * Dp) * 2 + (Dffp + Dp) * 4
                + Sp * Dp * 4 + Sp * Sp * 2)),              # out f32, attn bf16
    )(q_bf, k_bf, v_bf, x_p, key_mask, w1_p, b1_p, w2_p, b2_p)

    return out_p[:S, :d_model], [attn_p[:S, :S].astype(jnp.float32)]


def reference_forward(indices, params, d_internal):
    """Pure-JAX f32 reference for a correctness check."""
    emb = params["word_embedding"][indices]
    S = emb.shape[0]
    x = emb + (emb + params["pos_embedding"][:S])
    q = x @ params["wq"] + params["bq"]
    k = x @ params["wk"] + params["bk"]
    v = x @ params["wv"] + params["bv"]
    scores = (q @ k.T) / math.sqrt(d_internal)
    attn = jax.nn.softmax(scores, axis=-1)
    mp = attn @ v + x
    h = jax.nn.relu(mp @ params["w1"] + params["b1"])
    out = h @ params["w2"] + params["b2"] + mp
    return out, [attn]


if __name__ == "__main__":
    # small shapes consistent with the module (num_classes / num_layers unused by forward)
    vocab_size = 16
    num_positions = 20
    d_model = 32
    d_internal = 16
    d_ff = 64
    seq_len = 8

    key = jax.random.PRNGKey(0)
    k_idx, k_par = jax.random.split(key)
    indices = jax.random.randint(k_idx, (seq_len,), 0, vocab_size)
    params = make_params(k_par, vocab_size, num_positions, d_model, d_internal, d_ff)

    out, attn_list = transformer_forward(indices, params, d_internal)
    out = jax.block_until_ready(out)
    attn = jax.block_until_ready(attn_list[0])

    ref_out, ref_attn_list = reference_forward(indices, params, d_internal)
    assert out.shape == (seq_len, d_model)
    assert attn.shape == (seq_len, seq_len)
    # bf16 matmul operands / bf16 attn store (f32 accumulation) -> relaxed tolerance
    assert jnp.allclose(out, ref_out, atol=3e-2, rtol=3e-2), \
        float(jnp.max(jnp.abs(out - ref_out)))
    assert jnp.allclose(attn, ref_attn_list[0], atol=3e-2, rtol=3e-2)
    # attention rows over valid keys sum to ~1 (approx reciprocal + bf16 store)
    assert jnp.allclose(jnp.sum(attn, axis=-1), 1.0, atol=1e-2)

    print("KERNEL_OK")
</pallas_src>

<mosaic_0001>
module attributes {stable_mosaic.version = 11 : i64} {
  func.func @qkv_proj_kernel(%arg0: i32, %arg1: memref<128x128xbf16, #tpu.memory_space<vmem>>, %arg2: memref<128x128xbf16, #tpu.memory_space<vmem>>, %arg3: memref<1x128xf32, #tpu.memory_space<vmem>>, %arg4: memref<128x128xbf16, #tpu.memory_space<vmem>>, %arg5: memref<1x128xf32, #tpu.memory_space<vmem>>, %arg6: memref<128x128xbf16, #tpu.memory_space<vmem>>, %arg7: memref<1x128xf32, #tpu.memory_space<vmem>>, %arg8: memref<128x128xbf16, #tpu.memory_space<vmem>>, %arg9: memref<128x128xbf16, #tpu.memory_space<vmem>>, %arg10: memref<128x128xbf16, #tpu.memory_space<vmem>>) attributes {dimension_semantics = [#tpu.dimension_semantics<parallel>], iteration_bounds = array<i64: 1>, scalar_prefetch = 0 : i64, scratch_operands = 0 : i64, tpu.core_type = #tpu.core_type<tc>, window_params = [{transform_indices = @transform_0, window_bounds = array<i64: 128, 128>}, {pipeline_mode = #tpu.pipeline_mode<synchronous>, transform_indices = @transform_1, window_bounds = array<i64: 128, 128>}, {pipeline_mode = #tpu.pipeline_mode<synchronous>, transform_indices = @transform_2, window_bounds = array<i64: 1, 128>}, {pipeline_mode = #tpu.pipeline_mode<synchronous>, transform_indices = @transform_3, window_bounds = array<i64: 128, 128>}, {pipeline_mode = #tpu.pipeline_mode<synchronous>, transform_indices = @transform_4, window_bounds = array<i64: 1, 128>}, {pipeline_mode = #tpu.pipeline_mode<synchronous>, transform_indices = @transform_5, window_bounds = array<i64: 128, 128>}, {pipeline_mode = #tpu.pipeline_mode<synchronous>, transform_indices = @transform_6, window_bounds = array<i64: 1, 128>}, {transform_indices = @transform_7, window_bounds = array<i64: 128, 128>}, {transform_indices = @transform_8, window_bounds = array<i64: 128, 128>}, {transform_indices = @transform_9, window_bounds = array<i64: 128, 128>}]} {
    %c0 = arith.constant 0 : index
    %c0_0 = arith.constant 0 : index
    %0 = vector.load %arg1[%c0, %c0_0] : memref<128x128xbf16, #tpu.memory_space<vmem>>, vector<128x128xbf16>
    %c0_1 = arith.constant 0 : index
    %c0_2 = arith.constant 0 : index
    %1 = vector.load %arg2[%c0_1, %c0_2] : memref<128x128xbf16, #tpu.memory_space<vmem>>, vector<128x128xbf16>
    %cst = arith.constant dense<0.000000e+00> : vector<128x128xf32>
    %2 = tpu.matmul %0, %1, %cst {dimension_numbers = #tpu.dot_dimension_numbers<[1], [0], [0], [1], [0, 0, 1, 1], [], []>} : vector<128x128xbf16>, vector<128x128xbf16>, vector<128x128xf32> -> vector<128x128xf32>
    %c0_3 = arith.constant 0 : index
    %c0_4 = arith.constant 0 : index
    %3 = vector.load %arg3[%c0_3, %c0_4] : memref<1x128xf32, #tpu.memory_space<vmem>>, vector<1x128xf32>
    %4 = vector.broadcast %3 : vector<1x128xf32> to vector<128x128xf32>
    %5 = arith.addf %2, %4 : vector<128x128xf32>
    %6 = arith.truncf %5 : vector<128x128xf32> to vector<128x128xbf16>
    %c0_5 = arith.constant 0 : index
    %c0_6 = arith.constant 0 : index
    %7 = vector.load %arg8[%c0_5, %c0_6] : memref<128x128xbf16, #tpu.memory_space<vmem>>, vector<128x128xbf16>
    tpu.vector_store %arg8[%c0_5, %c0_6], %6 {strides = array<i32>} : memref<128x128xbf16, #tpu.memory_space<vmem>>, vector<128x128xbf16>,
    %c0_7 = arith.constant 0 : index
    %c0_8 = arith.constant 0 : index
    %8 = vector.load %arg4[%c0_7, %c0_8] : memref<128x128xbf16, #tpu.memory_space<vmem>>, vector<128x128xbf16>
    %cst_9 = arith.constant dense<0.000000e+00> : vector<128x128xf32>
    %9 = tpu.matmul %0, %8, %cst_9 {dimension_numbers = #tpu.dot_dimension_numbers<[1], [0], [0], [1], [0, 0, 1, 1], [], []>} : vector<128x128xbf16>, vector<128x128xbf16>, vector<128x128xf32> -> vector<128x128xf32>
    %c0_10 = arith.constant 0 : index
    %c0_11 = arith.constant 0 : index
    %10 = vector.load %arg5[%c0_10, %c0_11] : memref<1x128xf32, #tpu.memory_space<vmem>>, vector<1x128xf32>
    %11 = vector.broadcast %10 : vector<1x128xf32> to vector<128x128xf32>
    %12 = arith.addf %9, %11 : vector<128x128xf32>
    %13 = arith.truncf %12 : vector<128x128xf32> to vector<128x128xbf16>
    %c0_12 = arith.constant 0 : index
    %c0_13 = arith.constant 0 : index
    %14 = vector.load %arg9[%c0_12, %c0_13] : memref<128x128xbf16, #tpu.memory_space<vmem>>, vector<128x128xbf16>
    tpu.vector_store %arg9[%c0_12, %c0_13], %13 {strides = array<i32>} : memref<128x128xbf16, #tpu.memory_space<vmem>>, vector<128x128xbf16>,
    %c0_14 = arith.constant 0 : index
    %c0_15 = arith.constant 0 : index
    %15 = vector.load %arg6[%c0_14, %c0_15] : memref<128x128xbf16, #tpu.memory_space<vmem>>, vector<128x128xbf16>
    %cst_16 = arith.constant dense<0.000000e+00> : vector<128x128xf32>
    %16 = tpu.matmul %0, %15, %cst_16 {dimension_numbers = #tpu.dot_dimension_numbers<[1], [0], [0], [1], [0, 0, 1, 1], [], []>} : vector<128x128xbf16>, vector<128x128xbf16>, vector<128x128xf32> -> vector<128x128xf32>
    %c0_17 = arith.constant 0 : index
    %c0_18 = arith.constant 0 : index
    %17 = vector.load %arg7[%c0_17, %c0_18] : memref<1x128xf32, #tpu.memory_space<vmem>>, vector<1x128xf32>
    %18 = vector.broadcast %17 : vector<1x128xf32> to vector<128x128xf32>
    %19 = arith.addf %16, %18 : vector<128x128xf32>
    %20 = arith.truncf %19 : vector<128x128xf32> to vector<128x128xbf16>
    %c0_19 = arith.constant 0 : index
    %c0_20 = arith.constant 0 : index
    %21 = vector.load %arg10[%c0_19, %c0_20] : memref<128x128xbf16, #tpu.memory_space<vmem>>, vector<128x128xbf16>
    tpu.vector_store %arg10[%c0_19, %c0_20], %20 {strides = array<i32>} : memref<128x128xbf16, #tpu.memory_space<vmem>>, vector<128x128xbf16>,
    return
  }
  func.func @transform_0(%arg0: i32) -> (i32, i32) {
    %c0_i32 = arith.constant 0 : i32
    %c0_i32_0 = arith.constant 0 : i32
    return %arg0, %c0_i32 : i32, i32
  }
  func.func @transform_1(%arg0: i32) -> (i32, i32) {
    %c0_i32 = arith.constant 0 : i32
    %c0_i32_0 = arith.constant 0 : i32
    %c0_i32_1 = arith.constant 0 : i32
    return %c0_i32, %c0_i32_0 : i32, i32
  }
  func.func @transform_2(%arg0: i32) -> (i32, i32) {
    %c0_i32 = arith.constant 0 : i32
    %c0_i32_0 = arith.constant 0 : i32
    %c0_i32_1 = arith.constant 0 : i32
    return %c0_i32, %c0_i32_0 : i32, i32
  }
  func.func @transform_3(%arg0: i32) -> (i32, i32) {
    %c0_i32 = arith.constant 0 : i32
    %c0_i32_0 = arith.constant 0 : i32
    %c0_i32_1 = arith.constant 0 : i32
    return %c0_i32, %c0_i32_0 : i32, i32
  }
  func.func @transform_4(%arg0: i32) -> (i32, i32) {
    %c0_i32 = arith.constant 0 : i32
    %c0_i32_0 = arith.constant 0 : i32
    %c0_i32_1 = arith.constant 0 : i32
    return %c0_i32, %c0_i32_0 : i32, i32
  }
  func.func @transform_5(%arg0: i32) -> (i32, i32) {
    %c0_i32 = arith.constant 0 : i32
    %c0_i32_0 = arith.constant 0 : i32
    %c0_i32_1 = arith.constant 0 : i32
    return %c0_i32, %c0_i32_0 : i32, i32
  }
  func.func @transform_6(%arg0: i32) -> (i32, i32) {
    %c0_i32 = arith.constant 0 : i32
    %c0_i32_0 = arith.constant 0 : i32
    %c0_i32_1 = arith.constant 0 : i32
    return %c0_i32, %c0_i32_0 : i32, i32
  }
  func.func @transform_7(%arg0: i32) -> (i32, i32) {
    %c0_i32 = arith.constant 0 : i32
    %c0_i32_0 = arith.constant 0 : i32
    return %arg0, %c0_i32 : i32, i32
  }
  func.func @transform_8(%arg0: i32) -> (i32, i32) {
    %c0_i32 = arith.constant 0 : i32
    %c0_i32_0 = arith.constant 0 : i32
    return %arg0, %c0_i32 : i32, i32
  }
  func.func @transform_9(%arg0: i32) -> (i32, i32) {
    %c0_i32 = arith.constant 0 : i32
    %c0_i32_0 = arith.constant 0 : i32
    return %arg0, %c0_i32 : i32, i32
  }
}

</mosaic_0001>

<llo_original>
// kernel: tpu_custom_call.1
$region0: #{tpu_custom_call.1}
  #allocation0 [shape = 'u32[]', space=smem, size = 0x4, offset = 0x4, fixed_abs, tag = 'smem constant byte address 0x4 - core index']
  #allocation1 [shape = 'u32[144,128]{1,0:T(1,128)}', space=vmem, size = 0x12000, scoped, tag = 'internal scratch']
  %s0 = inlined_call_operand.hbm [shape: bf16[128,128], index: 0, kind: input, shape index: {}]
  %s1 = inlined_call_operand.hbm [shape: bf16[128,128], index: 1, kind: input, shape index: {}]
  %s2 = inlined_call_operand.vmem [shape: f32[1,128], index: 2, kind: input, shape index: {}]
  %s3 = inlined_call_operand.hbm [shape: bf16[128,128], index: 3, kind: input, shape index: {}]
  %s4 = inlined_call_operand.vmem [shape: f32[1,128], index: 4, kind: input, shape index: {}]
  %s5 = inlined_call_operand.hbm [shape: bf16[128,128], index: 5, kind: input, shape index: {}]
  %s6 = inlined_call_operand.vmem [shape: f32[1,128], index: 6, kind: input, shape index: {}]
  %s7 = inlined_call_operand.hbm [shape: bf16[128,128], index: 7, kind: output, shape index: {0}]
  %s8 = inlined_call_operand.hbm [shape: bf16[128,128], index: 8, kind: output, shape index: {1}]
  %s9 = inlined_call_operand.hbm [shape: bf16[128,128], index: 9, kind: output, shape index: {2}]
  %10 = xla_tuple %s7, %s8, %s9
  %s11 = sld [smem:[#allocation0]]
  $region70: #{tpu_custom_call.1} parent=0
    _
  %s13 = ssub.s32 1, %s11
  %s14 = scalar_select 0, %s13, %s11
  $region1: #{tpu_custom_call.1} parent=0
    #allocation2 [shape = 'u8[32768]{0}', space=vmem, size = 0x8000, scoped, tag = 'input window, operand 0, single buffered']
    #allocation3 [shape = 's32[1]{0}', space=sflag, size = 0x4, scoped, tag = 'scoped memory for tpu_custom_call.1']
    #allocation4 [shape = 's32[1]{0}', space=sflag, size = 0x4, scoped, tag = 'scoped memory for tpu_custom_call.1']
    #allocation5 [shape = 'u8[32768]{0}', space=vmem, size = 0x8000, scoped, tag = 'input window, operand 1, single buffered']
    #allocation6 [shape = 's32[1]{0}', space=sflag, size = 0x4, scoped, tag = 'scoped memory for tpu_custom_call.1']
    #allocation7 [shape = 'u8[32768]{0}', space=vmem, size = 0x8000, scoped, tag = 'input window, operand 3, single buffered']
    #allocation8 [shape = 'u8[32768]{0}', space=vmem, size = 0x8000, scoped, tag = 'input window, operand 5, single buffered']
    #allocation9 [shape = 's32[1]{0}', space=sflag, size = 0x4, scoped, tag = 'scoped memory for tpu_custom_call.1']
    #allocation10 [shape = 'u8[32768]{0}', space=vmem, size = 0x8000, scoped, tag = 'output window, operand 0, single buffered']
    #allocation11 [shape = 'u8[32768]{0}', space=vmem, size = 0x8000, scoped, tag = 'output window, operand 1, single buffered']
    #allocation12 [shape = 's32[1]{0}', space=sflag, size = 0x4, scoped, tag = 'scoped memory for tpu_custom_call.1']
    #allocation13 [shape = 'u8[32768]{0}', space=vmem, size = 0x8000, scoped, tag = 'output window, operand 2, single buffered']
    %15 = vsyncpa [#allocation3], 0
    %16 = vsyncpa [#allocation6], 0
    %17 = vsyncpa [#allocation9], 0
    %18 = vsyncpa [#allocation4], 0
    %19 = vsyncpa [#allocation12], 0
    // Predicated region
    $region2: #{tpu_custom_call.1} parent=1 // pred_check
      _
    $region3: #{tpu_custom_call.1} parent=1 // pred_check_branch
      %21 = sbr.rel (0) target = $region5
    $region4: #{tpu_custom_call.1} parent=1 // pred_region
      %s23 = ssub.s32 1024, 1024
      %24 = vsyncadd [#allocation3], %s23
      %s25 = sshll.u32 [#allocation2], 4
      %s26 = int_to_ptr.vmem [resolvable:$true] %s25
      %31 = dma.hbm_to_vmem [thread:$0]  %s0, 1024, %s26, [#allocation3], 64, 64, 4
    $region5: #{tpu_custom_call.1} parent=1 // pred_fallthru
      _
    // Predicated region
    $region6: #{tpu_custom_call.1} parent=1 // pred_check
      _
    $region7: #{tpu_custom_call.1} parent=1 // pred_check_branch
      %33 = sbr.rel (0) target = $region9
    $region8: #{tpu_custom_call.1} parent=1 // pred_region
      %s35 = ssub.s32 1024, 1024
      %36 = vsyncadd [#allocation6], %s35
      %s37 = sshll.u32 [#allocation5], 4
      %s38 = int_to_ptr.vmem [resolvable:$true] %s37
      %43 = dma.hbm_to_vmem [thread:$0]  %s1, 1024, %s38, [#allocation6], 64, 64, 4
    $region9: #{tpu_custom_call.1} parent=1 // pred_fallthru
      _
    // Predicated region
    $region10: #{tpu_custom_call.1} parent=1 // pred_check
      _
    $region11: #{tpu_custom_call.1} parent=1 // pred_check_branch
      %45 = sbr.rel (0) target = $region13
    $region12: #{tpu_custom_call.1} parent=1 // pred_region
      _
    $region13: #{tpu_custom_call.1} parent=1 // pred_fallthru
      _
    // Predicated region
    $region14: #{tpu_custom_call.1} parent=1 // pred_check
      _
    $region15: #{tpu_custom_call.1} parent=1 // pred_check_branch
      %47 = sbr.rel (0) target = $region17
    $region16: #{tpu_custom_call.1} parent=1 // pred_region
      %s49 = ssub.s32 1024, 1024
      %50 = vsyncadd [#allocation6], %s49
      %s51 = sshll.u32 [#allocation7], 4
      %s52 = int_to_ptr.vmem [resolvable:$true] %s51
      %57 = dma.hbm_to_vmem [thread:$0]  %s3, 1024, %s52, [#allocation6], 64, 64, 4
    $region17: #{tpu_custom_call.1} parent=1 // pred_fallthru
      _
    // Predicated region
    $region18: #{tpu_custom_call.1} parent=1 // pred_check
      _
    $region19: #{tpu_custom_call.1} parent=1 // pred_check_branch
      %59 = sbr.rel (0) target = $region21
    $region20: #{tpu_custom_call.1} parent=1 // pred_region
      _
    $region21: #{tpu_custom_call.1} parent=1 // pred_fallthru
      _
    // Predicated region
    $region22: #{tpu_custom_call.1} parent=1 // pred_check
      _
    $region23: #{tpu_custom_call.1} parent=1 // pred_check_branch
      %61 = sbr.rel (0) target = $region25
    $region24: #{tpu_custom_call.1} parent=1 // pred_region
      %s63 = ssub.s32 1024, 1024
      %64 = vsyncadd [#allocation9], %s63
      %s65 = sshll.u32 [#allocation8], 4
      %s66 = int_to_ptr.vmem [resolvable:$true] %s65
      %71 = dma.hbm_to_vmem [thread:$0]  %s5, 1024, %s66, [#allocation9], 64, 64, 4
    $region25: #{tpu_custom_call.1} parent=1 // pred_fallthru
      _
    // Predicated region
    $region26: #{tpu_custom_call.1} parent=1 // pred_check
      _
    $region27: #{tpu_custom_call.1} parent=1 // pred_check_branch
      %73 = sbr.rel (0) target = $region29
    $region28: #{tpu_custom_call.1} parent=1 // pred_region
      _
    $region29: #{tpu_custom_call.1} parent=1 // pred_fallthru
      _
    // Predicated region
    $region30: #{tpu_custom_call.1} parent=1 // pred_check
      _
    $region31: #{tpu_custom_call.1} parent=1 // pred_check_branch
      %75 = sbr.rel (0) target = $region33
    $region32: #{tpu_custom_call.1} parent=1 // pred_region
      %76 = dma.done [#allocation3], 1024
    $region33: #{tpu_custom_call.1} parent=1 // pred_fallthru
      _
    // Predicated region
    $region34: #{tpu_custom_call.1} parent=1 // pred_check
      _
    $region35: #{tpu_custom_call.1} parent=1 // pred_check_branch
      %78 = sbr.rel (0) target = $region37
    $region36: #{tpu_custom_call.1} parent=1 // pred_region
      %79 = dma.done [#allocation6], 1024
    $region37: #{tpu_custom_call.1} parent=1 // pred_fallthru
      _
    // Predicated region
    $region38: #{tpu_custom_call.1} parent=1 // pred_check
      _
    $region39: #{tpu_custom_call.1} parent=1 // pred_check_branch
      %81 = sbr.rel (0) target = $region41
    $region40: #{tpu_custom_call.1} parent=1 // pred_region
      %82 = dma.done [#allocation6], 1024
    $region41: #{tpu_custom_call.1} parent=1 // pred_fallthru
      _
    // Predicated region
    $region42: #{tpu_custom_call.1} parent=1 // pred_check
      _
    $region43: #{tpu_custom_call.1} parent=1 // pred_check_branch
      %84 = sbr.rel (0) target = $region45
    $region44: #{tpu_custom_call.1} parent=1 // pred_region
      %85 = dma.done [#allocation9], 1024
    $region45: #{tpu_custom_call.1} parent=1 // pred_fallthru
      _
    %v87 = vld [vmem:[#allocation2] sm:$0xf]
    %v88 = vld [vmem:[#allocation2 + $0x4] sm:$0xf]
    %v89 = vld [vmem:[#allocation2 + $0x8] sm:$0xf]
    %v90 = vld [vmem:[#allocation2 + $0xc] sm:$0xf]
    %v91 = vld [vmem:[#allocation2 + $0x10] sm:$0xf]
    %v92 = vld [vmem:[#allocation2 + $0x14] sm:$0xf]
    %v93 = vld [vmem:[#allocation2 + $0x18] sm:$0xf]
    %v94 = vld [vmem:[#allocation2 + $0x1c] sm:$0xf]
    %v95 = vld [vmem:[#allocation2 + $0x20] sm:$0xf]
    %v96 = vld [vmem:[#allocation2 + $0x24] sm:$0xf]
    %v97 = vld [vmem:[#allocation2 + $0x28] sm:$0xf]
    %v98 = vld [vmem:[#allocation2 + $0x2c] sm:$0xf]
    %v99 = vld [vmem:[#allocation2 + $0x30] sm:$0xf]
    %v100 = vld [vmem:[#allocation2 + $0x34] sm:$0xf]
    %v101 = vld [vmem:[#allocation2 + $0x38] sm:$0xf]
    %v102 = vld [vmem:[#allocation2 + $0x3c] sm:$0xf]
    %v103 = vld [vmem:[#allocation5] sm:$0xf]
    %v104 = vld [vmem:[#allocation5 + $0x4] sm:$0xf]
    %v105 = vld [vmem:[#allocation5 + $0x8] sm:$0xf]
    %v106 = vld [vmem:[#allocation5 + $0xc] sm:$0xf]
    %v107 = vld [vmem:[#allocation5 + $0x10] sm:$0xf]
    %v108 = vld [vmem:[#allocation5 + $0x14] sm:$0xf]
    %v109 = vld [vmem:[#allocation5 + $0x18] sm:$0xf]
    %v110 = vld [vmem:[#allocation5 + $0x1c] sm:$0xf]
    %v111 = vld [vmem:[#allocation5 + $0x20] sm:$0xf]
    %v112 = vld [vmem:[#allocation5 + $0x24] sm:$0xf]
    %v113 = vld [vmem:[#allocation5 + $0x28] sm:$0xf]
    %v114 = vld [vmem:[#allocation5 + $0x2c] sm:$0xf]
    %v115 = vld [vmem:[#allocation5 + $0x30] sm:$0xf]
    %v116 = vld [vmem:[#allocation5 + $0x34] sm:$0xf]
    %v117 = vld [vmem:[#allocation5 + $0x38] sm:$0xf]
    %v118 = vld [vmem:[#allocation5 + $0x3c] sm:$0xf]
    %v119 = vld [vmem:[%s2] sm:$0x1]
    %v121 = vlaneseq
    %v122 = vshrl.u32 %v121, 7
    %v123 = vsub.s32 0, %v122
    %v124 = vrot.slane %v119, %v123
    %v142 = vunpack.c.l.b16 %v87
    %v143 = vunpack.c.l.b16 %v88
    %v144 = vunpack.c.l.b16 %v89
    %v145 = vunpack.c.l.b16 %v90
    %v146 = vunpack.c.l.b16 %v91
    %v147 = vunpack.c.l.b16 %v92
    %v148 = vunpack.c.l.b16 %v93
    %v149 = vunpack.c.l.b16 %v94
    %v150 = vunpack.c.l.b16 %v95
    %v151 = vunpack.c.l.b16 %v96
    %v152 = vunpack.c.l.b16 %v97
    %v153 = vunpack.c.l.b16 %v98
    %v154 = vunpack.c.l.b16 %v99
    %v155 = vunpack.c.l.b16 %v100
    %v156 = vunpack.c.l.b16 %v101
    %v157 = vunpack.c.l.b16 %v102
    %v158 = vpack.c.b16 %v143, %v142
    %v159 = vpack.c.b16 %v145, %v144
    %v160 = vpack.c.b16 %v147, %v146
    %v161 = vpack.c.b16 %v149, %v148
    %v162 = vpack.c.b16 %v151, %v150
    %v163 = vpack.c.b16 %v153, %v152
    %v164 = vpack.c.b16 %v155, %v154
    %v165 = vpack.c.b16 %v157, %v156
    %v190 = vunpack.c.l.b16 %v103
    %v191 = vunpack.c.l.b16 %v104
    %v192 = vunpack.c.l.b16 %v105
    %v193 = vunpack.c.l.b16 %v106
    %v194 = vunpack.c.l.b16 %v107
    %v195 = vunpack.c.l.b16 %v108
    %v196 = vunpack.c.l.b16 %v109
    %v197 = vunpack.c.l.b16 %v110
    %v198 = vunpack.c.l.b16 %v111
    %v199 = vunpack.c.l.b16 %v112
    %v200 = vunpack.c.l.b16 %v113
    %v201 = vunpack.c.l.b16 %v114
    %v202 = vunpack.c.l.b16 %v115
    %v203 = vunpack.c.l.b16 %v116
    %v204 = vunpack.c.l.b16 %v117
    %v205 = vunpack.c.l.b16 %v118
    %v206 = vpack.c.b16 %v191, %v190
    %v207 = vpack.c.b16 %v193, %v192
    %v208 = vpack.c.b16 %v195, %v194
    %v209 = vpack.c.b16 %v197, %v196
    %v210 = vpack.c.b16 %v199, %v198
    %v211 = vpack.c.b16 %v201, %v200
    %v212 = vpack.c.b16 %v203, %v202
    %v213 = vpack.c.b16 %v205, %v204
    %222 = vmatprep.subr.bf16.mxu0 0
    %223 = vmatpush1.bf16.msra.mxu0 %v206
    %224 = vmatprep.subr.bf16.mxu0 0
    %225 = vmatpush1.bf16.msra.mxu0 %v207
    %226 = vmatprep.subr.bf16.mxu0 0
    %227 = vmatpush1.bf16.msra.mxu0 %v208
    %228 = vmatprep.subr.bf16.mxu0 0
    %229 = vmatpush1.bf16.msra.mxu0 %v209
    %230 = vmatprep.subr.bf16.mxu0 0
    %231 = vmatpush1.bf16.msra.mxu0 %v210
    %232 = vmatprep.subr.bf16.mxu0 0
    %233 = vmatpush1.bf16.msra.mxu0 %v211
    %234 = vmatprep.subr.bf16.mxu0 0
    %235 = vmatpush1.bf16.msra.mxu0 %v212
    %236 = vmatprep.subr.bf16.mxu0 0
    %237 = vmatpush1.bf16.msra.mxu0 %v213
    %238 = vmatprep.subr.bf16.mxu0 0
    %239 = vmatpush1.bf16.msra.mxu0 0
    %240 = vmatprep.subr.bf16.mxu0 0
    %241 = vmatpush1.bf16.msra.mxu0 0
    %242 = vmatprep.subr.bf16.mxu0 0
    %243 = vmatpush1.bf16.msra.mxu0 0
    %244 = vmatprep.subr.bf16.mxu0 0
    %245 = vmatpush1.bf16.msra.mxu0 0
    %246 = vmatprep.subr.bf16.mxu0 0
    %247 = vmatpush1.bf16.msra.mxu0 0
    %248 = vmatprep.subr.bf16.mxu0 0
    %249 = vmatpush1.bf16.msra.mxu0 0
    %250 = vmatprep.subr.bf16.mxu0 0
    %251 = vmatpush1.bf16.msra.mxu0 0
    %252 = vmatprep.subr.bf16.mxu0 0
    %253 = vmatpush1.bf16.msra.mxu0 0
    %254 = vmatprep.mubr.bf16.mxu0 0
    %255 = vmatmul.mubr.bf16.gmra.mrb[0].mxu0 %v158
    %v256 = vpop.f32.mrb[0].mxu0
    %v257 = vadd.f32 %v124, %v256
    %v258 = vpop.f32.mrb[0].mxu0
    %v259 = vpop.f32.mrb[0].mxu0
    %v260 = vadd.f32 %v124, %v259
    %v261 = vpop.f32.mrb[0].mxu0
    %262 = vmatprep.mubr.bf16.mxu0 0
    %263 = vmatmul.mubr.bf16.gmra.mrb[0].mxu0 %v159
    %v264 = vpop.f32.mrb[0].mxu0
    %v265 = vadd.f32 %v124, %v264
    %v266 = vpop.f32.mrb[0].mxu0
    %v267 = vpop.f32.mrb[0].mxu0
    %v268 = vadd.f32 %v124, %v267
    %v269 = vpop.f32.mrb[0].mxu0
    %270 = vmatprep.mubr.bf16.mxu0 0
    %271 = vmatmul.mubr.bf16.gmra.mrb[0].mxu0 %v160
    %v272 = vpop.f32.mrb[0].mxu0
    %v273 = vadd.f32 %v124, %v272
    %v274 = vpop.f32.mrb[0].mxu0
    %v275 = vpop.f32.mrb[0].mxu0
    %v276 = vadd.f32 %v124, %v275
    %v277 = vpop.f32.mrb[0].mxu0
    %278 = vmatprep.mubr.bf16.mxu0 0
    %279 = vmatmul.mubr.bf16.gmra.mrb[0].mxu0 %v161
    %v280 = vpop.f32.mrb[0].mxu0
    %v281 = vadd.f32 %v124, %v280
    %v282 = vpop.f32.mrb[0].mxu0
    %v283 = vpop.f32.mrb[0].mxu0
    %v284 = vadd.f32 %v124, %v283
    %v285 = vpop.f32.mrb[0].mxu0
    %286 = vmatprep.mubr.bf16.mxu0 0
    %287 = vmatmul.mubr.bf16.gmra.mrb[0].mxu0 %v162
    %v288 = vpop.f32.mrb[0].mxu0
    %v289 = vadd.f32 %v124, %v288
    %v290 = vpop.f32.mrb[0].mxu0
    %v291 = vpop.f32.mrb[0].mxu0
    %v292 = vadd.f32 %v124, %v291
    %v293 = vpop.f32.mrb[0].mxu0
    %294 = vmatprep.mubr.bf16.mxu0 0
    %295 = vmatmul.mubr.bf16.gmra.mrb[0].mxu0 %v163
    %v296 = vpop.f32.mrb[0].mxu0
    %v297 = vadd.f32 %v124, %v296
    %v298 = vpop.f32.mrb[0].mxu0
    %v299 = vpop.f32.mrb[0].mxu0
    %v300 = vadd.f32 %v124, %v299
    %v301 = vpop.f32.mrb[0].mxu0
    %302 = vmatprep.mubr.bf16.mxu0 0
    %303 = vmatmul.mubr.bf16.gmra.mrb[0].mxu0 %v164
    %v304 = vpop.f32.mrb[0].mxu0
    %v305 = vadd.f32 %v124, %v304
    %v306 = vpop.f32.mrb[0].mxu0
    %v307 = vpop.f32.mrb[0].mxu0
    %v308 = vadd.f32 %v124, %v307
    %v309 = vpop.f32.mrb[0].mxu0
    %310 = vmatprep.mubr.bf16.mxu0 0
    %311 = vmatmul.mubr.bf16.gmra.mrb[0].mxu0 %v165
    %v312 = vpop.f32.mrb[0].mxu0
    %v313 = vadd.f32 %v124, %v312
    %v314 = vpop.f32.mrb[0].mxu0
    %v315 = vpop.f32.mrb[0].mxu0
    %v316 = vadd.f32 %v124, %v315
    %v317 = vpop.f32.mrb[0].mxu0
    %318 = vdwg.mxu0
    %v319 = vpack.c.bf16 %v260, %v257
    %v320 = vpack.c.bf16 %v268, %v265
    %v321 = vpack.c.bf16 %v276, %v273
    %v322 = vpack.c.bf16 %v284, %v281
    %v323 = vpack.c.bf16 %v292, %v289
    %v324 = vpack.c.bf16 %v300, %v297
    %v325 = vpack.c.bf16 %v308, %v305
    %v326 = vpack.c.bf16 %v316, %v313
    %v335 = vunpack.c.l.b16 %v319
    %v336 = vunpack.c.h.b16 %v319
    %v337 = vunpack.c.l.b16 %v320
    %v338 = vunpack.c.h.b16 %v320
    %v339 = vunpack.c.l.b16 %v321
    %v340 = vunpack.c.h.b16 %v321
    %v341 = vunpack.c.l.b16 %v322
    %v342 = vunpack.c.h.b16 %v322
    %v343 = vunpack.c.l.b16 %v323
    %v344 = vunpack.c.h.b16 %v323
    %v345 = vunpack.c.l.b16 %v324
    %v346 = vunpack.c.h.b16 %v324
    %v347 = vunpack.c.l.b16 %v325
    %v348 = vunpack.c.h.b16 %v325
    %v349 = vunpack.c.l.b16 %v326
    %v350 = vunpack.c.h.b16 %v326
    %v351 = vpack.c.b16 %v335, %v335
    %v352 = vpack.c.b16 %v336, %v336
    %v353 = vpack.c.b16 %v337, %v337
    %v354 = vpack.c.b16 %v338, %v338
    %v355 = vpack.c.b16 %v339, %v339
    %v356 = vpack.c.b16 %v340, %v340
    %v357 = vpack.c.b16 %v341, %v341
    %v358 = vpack.c.b16 %v342, %v342
    %v359 = vpack.c.b16 %v343, %v343
    %v360 = vpack.c.b16 %v344, %v344
    %v361 = vpack.c.b16 %v345, %v345
    %v362 = vpack.c.b16 %v346, %v346
    %v363 = vpack.c.b16 %v347, %v347
    %v364 = vpack.c.b16 %v348, %v348
    %v365 = vpack.c.b16 %v349, %v349
    %v366 = vpack.c.b16 %v350, %v350
    %383 = vst [vmem:[#allocation10] sm:$0xf] %v351
    %384 = vst [vmem:[#allocation10 + $0x4] sm:$0xf] %v352
    %385 = vst [vmem:[#allocation10 + $0x8] sm:$0xf] %v353
    %386 = vst [vmem:[#allocation10 + $0xc] sm:$0xf] %v354
    %387 = vst [vmem:[#allocation10 + $0x10] sm:$0xf] %v355
    %388 = vst [vmem:[#allocation10 + $0x14] sm:$0xf] %v356
    %389 = vst [vmem:[#allocation10 + $0x18] sm:$0xf] %v357
    %390 = vst [vmem:[#allocation10 + $0x1c] sm:$0xf] %v358
    %391 = vst [vmem:[#allocation10 + $0x20] sm:$0xf] %v359
    %392 = vst [vmem:[#allocation10 + $0x24] sm:$0xf] %v360
    %393 = vst [vmem:[#allocation10 + $0x28] sm:$0xf] %v361
    %394 = vst [vmem:[#allocation10 + $0x2c] sm:$0xf] %v362
    %395 = vst [vmem:[#allocation10 + $0x30] sm:$0xf] %v363
    %396 = vst [vmem:[#allocation10 + $0x34] sm:$0xf] %v364
    %397 = vst [vmem:[#allocation10 + $0x38] sm:$0xf] %v365
    %398 = vst [vmem:[#allocation10 + $0x3c] sm:$0xf] %v366
    %v399 = vld [vmem:[#allocation7] sm:$0xf]
    %v400 = vld [vmem:[#allocation7 + $0x4] sm:$0xf]
    %v401 = vld [vmem:[#allocation7 + $0x8] sm:$0xf]
    %v402 = vld [vmem:[#allocation7 + $0xc] sm:$0xf]
    %v403 = vld [vmem:[#allocation7 + $0x10] sm:$0xf]
    %v404 = vld [vmem:[#allocation7 + $0x14] sm:$0xf]
    %v405 = vld [vmem:[#allocation7 + $0x18] sm:$0xf]
    %v406 = vld [vmem:[#allocation7 + $0x1c] sm:$0xf]
    %v407 = vld [vmem:[#allocation7 + $0x20] sm:$0xf]
    %v408 = vld [vmem:[#allocation7 + $0x24] sm:$0xf]
    %v409 = vld [vmem:[#allocation7 + $0x28] sm:$0xf]
    %v410 = vld [vmem:[#allocation7 + $0x2c] sm:$0xf]
    %v411 = vld [vmem:[#allocation7 + $0x30] sm:$0xf]
    %v412 = vld [vmem:[#allocation7 + $0x34] sm:$0xf]
    %v413 = vld [vmem:[#allocation7 + $0x38] sm:$0xf]
    %v414 = vld [vmem:[#allocation7 + $0x3c] sm:$0xf]
    %v415 = vld [vmem:[%s4] sm:$0x1]
    %v417 = vlaneseq
    %v418 = vshrl.u32 %v417, 7
    %v419 = vsub.s32 0, %v418
    %v420 = vrot.slane %v415, %v419
    %v438 = vunpack.c.l.b16 %v399
    %v439 = vunpack.c.l.b16 %v400
    %v440 = vunpack.c.l.b16 %v401
    %v441 = vunpack.c.l.b16 %v402
    %v442 = vunpack.c.l.b16 %v403
    %v443 = vunpack.c.l.b16 %v404
    %v444 = vunpack.c.l.b16 %v405
    %v445 = vunpack.c.l.b16 %v406
    %v446 = vunpack.c.l.b16 %v407
    %v447 = vunpack.c.l.b16 %v408
    %v448 = vunpack.c.l.b16 %v409
    %v449 = vunpack.c.l.b16 %v410
    %v450 = vunpack.c.l.b16 %v411
    %v451 = vunpack.c.l.b16 %v412
    %v452 = vunpack.c.l.b16 %v413
    %v453 = vunpack.c.l.b16 %v414
    %v454 = vpack.c.b16 %v439, %v438
    %v455 = vpack.c.b16 %v441, %v440
    %v456 = vpack.c.b16 %v443, %v442
    %v457 = vpack.c.b16 %v445, %v444
    %v458 = vpack.c.b16 %v447, %v446
    %v459 = vpack.c.b16 %v449, %v448
    %v460 = vpack.c.b16 %v451, %v450
    %v461 = vpack.c.b16 %v453, %v452
    %470 = vmatprep.subr.bf16.mxu0 0
    %471 = vmatpush1.bf16.msra.mxu0 %v454
    %472 = vmatprep.subr.bf16.mxu0 0
    %473 = vmatpush1.bf16.msra.mxu0 %v455
    %474 = vmatprep.subr.bf16.mxu0 0
    %475 = vmatpush1.bf16.msra.mxu0 %v456
    %476 = vmatprep.subr.bf16.mxu0 0
    %477 = vmatpush1.bf16.msra.mxu0 %v457
    %478 = vmatprep.subr.bf16.mxu0 0
    %479 = vmatpush1.bf16.msra.mxu0 %v458
    %480 = vmatprep.subr.bf16.mxu0 0
    %481 = vmatpush1.bf16.msra.mxu0 %v459
    %482 = vmatprep.subr.bf16.mxu0 0
    %483 = vmatpush1.bf16.msra.mxu0 %v460
    %484 = vmatprep.subr.bf16.mxu0 0
    %485 = vmatpush1.bf16.msra.mxu0 %v461
    %486 = vmatprep.subr.bf16.mxu0 0
    %487 = vmatpush1.bf16.msra.mxu0 0
    %488 = vmatprep.subr.bf16.mxu0 0
    %489 = vmatpush1.bf16.msra.mxu0 0
    %490 = vmatprep.subr.bf16.mxu0 0
    %491 = vmatpush1.bf16.msra.mxu0 0
    %492 = vmatprep.subr.bf16.mxu0 0
    %493 = vmatpush1.bf16.msra.mxu0 0
    %494 = vmatprep.subr.bf16.mxu0 0
    %495 = vmatpush1.bf16.msra.mxu0 0
    %496 = vmatprep.subr.bf16.mxu0 0
    %497 = vmatpush1.bf16.msra.mxu0 0
    %498 = vmatprep.subr.bf16.mxu0 0
    %499 = vmatpush1.bf16.msra.mxu0 0
    %500 = vmatprep.subr.bf16.mxu0 0
    %501 = vmatpush1.bf16.msra.mxu0 0
    %502 = vmatprep.mubr.bf16.mxu0 0
    %503 = vmatmul.mubr.bf16.gmra.mrb[0].mxu0 %v158
    %v504 = vpop.f32.mrb[0].mxu0
    %v505 = vadd.f32 %v420, %v504
    %v506 = vpop.f32.mrb[0].mxu0
    %v507 = vpop.f32.mrb[0].mxu0
    %v508 = vadd.f32 %v420, %v507
    %v509 = vpop.f32.mrb[0].mxu0
    %510 = vmatprep.mubr.bf16.mxu0 0
    %511 = vmatmul.mubr.bf16.gmra.mrb[0].mxu0 %v159
    %v512 = vpop.f32.mrb[0].mxu0
    %v513 = vadd.f32 %v420, %v512
    %v514 = vpop.f32.mrb[0].mxu0
    %v515 = vpop.f32.mrb[0].mxu0
    %v516 = vadd.f32 %v420, %v515
    %v517 = vpop.f32.mrb[0].mxu0
    %518 = vmatprep.mubr.bf16.mxu0 0
    %519 = vmatmul.mubr.bf16.gmra.mrb[0].mxu0 %v160
    %v520 = vpop.f32.mrb[0].mxu0
    %v521 = vadd.f32 %v420, %v520
    %v522 = vpop.f32.mrb[0].mxu0
    %v523 = vpop.f32.mrb[0].mxu0
    %v524 = vadd.f32 %v420, %v523
    %v525 = vpop.f32.mrb[0].mxu0
    %526 = vmatprep.mubr.bf16.mxu0 0
    %527 = vmatmul.mubr.bf16.gmra.mrb[0].mxu0 %v161
    %v528 = vpop.f32.mrb[0].mxu0
    %v529 = vadd.f32 %v420, %v528
    %v530 = vpop.f32.mrb[0].mxu0
    %v531 = vpop.f32.mrb[0].mxu0
    %v532 = vadd.f32 %v420, %v531
    %v533 = vpop.f32.mrb[0].mxu0
    %534 = vmatprep.mubr.bf16.mxu0 0
    %535 = vmatmul.mubr.bf16.gmra.mrb[0].mxu0 %v162
    %v536 = vpop.f32.mrb[0].mxu0
    %v537 = vadd.f32 %v420, %v536
    %v538 = vpop.f32.mrb[0].mxu0
    %v539 = vpop.f32.mrb[0].mxu0
    %v540 = vadd.f32 %v420, %v539
    %v541 = vpop.f32.mrb[0].mxu0
    %542 = vmatprep.mubr.bf16.mxu0 0
    %543 = vmatmul.mubr.bf16.gmra.mrb[0].mxu0 %v163
    %v544 = vpop.f32.mrb[0].mxu0
    %v545 = vadd.f32 %v420, %v544
    %v546 = vpop.f32.mrb[0].mxu0
    %v547 = vpop.f32.mrb[0].mxu0
    %v548 = vadd.f32 %v420, %v547
    %v549 = vpop.f32.mrb[0].mxu0
    %550 = vmatprep.mubr.bf16.mxu0 0
    %551 = vmatmul.mubr.bf16.gmra.mrb[0].mxu0 %v164
    %v552 = vpop.f32.mrb[0].mxu0
    %v553 = vadd.f32 %v420, %v552
    %v554 = vpop.f32.mrb[0].mxu0
    %v555 = vpop.f32.mrb[0].mxu0
    %v556 = vadd.f32 %v420, %v555
    %v557 = vpop.f32.mrb[0].mxu0
    %558 = vmatprep.mubr.bf16.mxu0 0
    %559 = vmatmul.mubr.bf16.gmra.mrb[0].mxu0 %v165
    %v560 = vpop.f32.mrb[0].mxu0
    %v561 = vadd.f32 %v420, %v560
    %v562 = vpop.f32.mrb[0].mxu0
    %v563 = vpop.f32.mrb[0].mxu0
    %v564 = vadd.f32 %v420, %v563
    %v565 = vpop.f32.mrb[0].mxu0
    %566 = vdwg.mxu0
    %v567 = vpack.c.bf16 %v508, %v505
    %v568 = vpack.c.bf16 %v516, %v513
    %v569 = vpack.c.bf16 %v524, %v521
    %v570 = vpack.c.bf16 %v532, %v529
    %v571 = vpack.c.bf16 %v540, %v537
    %v572 = vpack.c.bf16 %v548, %v545
    %v573 = vpack.c.bf16 %v556, %v553
    %v574 = vpack.c.bf16 %v564, %v561
    %v583 = vunpack.c.l.b16 %v567
    %v584 = vunpack.c.h.b16 %v567
    %v585 = vunpack.c.l.b16 %v568
    %v586 = vunpack.c.h.b16 %v568
    %v587 = vunpack.c.l.b16 %v569
    %v588 = vunpack.c.h.b16 %v569
    %v589 = vunpack.c.l.b16 %v570
    %v590 = vunpack.c.h.b16 %v570
    %v591 = vunpack.c.l.b16 %v571
    %v592 = vunpack.c.h.b16 %v571
    %v593 = vunpack.c.l.b16 %v572
    %v594 = vunpack.c.h.b16 %v572
    %v595 = vunpack.c.l.b16 %v573
    %v596 = vunpack.c.h.b16 %v573
    %v597 = vunpack.c.l.b16 %v574
    %v598 = vunpack.c.h.b16 %v574
    %v599 = vpack.c.b16 %v583, %v583
    %v600 = vpack.c.b16 %v584, %v584
    %v601 = vpack.c.b16 %v585, %v585
    %v602 = vpack.c.b16 %v586, %v586
    %v603 = vpack.c.b16 %v587, %v587
    %v604 = vpack.c.b16 %v588, %v588
    %v605 = vpack.c.b16 %v589, %v589
    %v606 = vpack.c.b16 %v590, %v590
    %v607 = vpack.c.b16 %v591, %v591
    %v608 = vpack.c.b16 %v592, %v592
    %v609 = vpack.c.b16 %v593, %v593
    %v610 = vpack.c.b16 %v594, %v594
    %v611 = vpack.c.b16 %v595, %v595
    %v612 = vpack.c.b16 %v596, %v596
    %v613 = vpack.c.b16 %v597, %v597
    %v614 = vpack.c.b16 %v598, %v598
    %631 = vst [vmem:[#allocation11] sm:$0xf] %v599
    %632 = vst [vmem:[#allocation11 + $0x4] sm:$0xf] %v600
    %633 = vst [vmem:[#allocation11 + $0x8] sm:$0xf] %v601
    %634 = vst [vmem:[#allocation11 + $0xc] sm:$0xf] %v602
    %635 = vst [vmem:[#allocation11 + $0x10] sm:$0xf] %v603
    %636 = vst [vmem:[#allocation11 + $0x14] sm:$0xf] %v604
    %637 = vst [vmem:[#allocation11 + $0x18] sm:$0xf] %v605
    %638 = vst [vmem:[#allocation11 + $0x1c] sm:$0xf] %v606
    %639 = vst [vmem:[#allocation11 + $0x20] sm:$0xf] %v607
    %640 = vst [vmem:[#allocation11 + $0x24] sm:$0xf] %v608
    %641 = vst [vmem:[#allocation11 + $0x28] sm:$0xf] %v609
    %642 = vst [vmem:[#allocation11 + $0x2c] sm:$0xf] %v610
    %643 = vst [vmem:[#allocation11 + $0x30] sm:$0xf] %v611
    %644 = vst [vmem:[#allocation11 + $0x34] sm:$0xf] %v612
    %645 = vst [vmem:[#allocation11 + $0x38] sm:$0xf] %v613
    %646 = vst [vmem:[#allocation11 + $0x3c] sm:$0xf] %v614
    %v647 = vld [vmem:[#allocation8] sm:$0xf]
    %v648 = vld [vmem:[#allocation8 + $0x4] sm:$0xf]
    %v649 = vld [vmem:[#allocation8 + $0x8] sm:$0xf]
    %v650 = vld [vmem:[#allocation8 + $0xc] sm:$0xf]
    %v651 = vld [vmem:[#allocation8 + $0x10] sm:$0xf]
    %v652 = vld [vmem:[#allocation8 + $0x14] sm:$0xf]
    %v653 = vld [vmem:[#allocation8 + $0x18] sm:$0xf]
    %v654 = vld [vmem:[#allocation8 + $0x1c] sm:$0xf]
    %v655 = vld [vmem:[#allocation8 + $0x20] sm:$0xf]
    %v656 = vld [vmem:[#allocation8 + $0x24] sm:$0xf]
    %v657 = vld [vmem:[#allocation8 + $0x28] sm:$0xf]
    %v658 = vld [vmem:[#allocation8 + $0x2c] sm:$0xf]
    %v659 = vld [vmem:[#allocation8 + $0x30] sm:$0xf]
    %v660 = vld [vmem:[#allocation8 + $0x34] sm:$0xf]
    %v661 = vld [vmem:[#allocation8 + $0x38] sm:$0xf]
    %v662 = vld [vmem:[#allocation8 + $0x3c] sm:$0xf]
    %v663 = vld [vmem:[%s6] sm:$0x1]
    %v665 = vlaneseq
    %v666 = vshrl.u32 %v665, 7
    %v667 = vsub.s32 0, %v666
    %v668 = vrot.slane %v663, %v667
    %v686 = vunpack.c.l.b16 %v647
    %v687 = vunpack.c.l.b16 %v648
    %v688 = vunpack.c.l.b16 %v649
    %v689 = vunpack.c.l.b16 %v650
    %v690 = vunpack.c.l.b16 %v651
    %v691 = vunpack.c.l.b16 %v652
    %v692 = vunpack.c.l.b16 %v653
    %v693 = vunpack.c.l.b16 %v654
    %v694 = vunpack.c.l.b16 %v655
    %v695 = vunpack.c.l.b16 %v656
    %v696 = vunpack.c.l.b16 %v657
    %v697 = vunpack.c.l.b16 %v658
    %v698 = vunpack.c.l.b16 %v659
    %v699 = vunpack.c.l.b16 %v660
    %v700 = vunpack.c.l.b16 %v661
    %v701 = vunpack.c.l.b16 %v662
    %v702 = vpack.c.b16 %v687, %v686
    %v703 = vpack.c.b16 %v689, %v688
    %v704 = vpack.c.b16 %v691, %v690
    %v705 = vpack.c.b16 %v693, %v692
    %v706 = vpack.c.b16 %v695, %v694
    %v707 = vpack.c.b16 %v697, %v696
    %v708 = vpack.c.b16 %v699, %v698
    %v709 = vpack.c.b16 %v701, %v700
    %718 = vmatprep.subr.bf16.mxu0 0
    %719 = vmatpush1.bf16.msra.mxu0 %v702
    %720 = vmatprep.subr.bf16.mxu0 0
    %721 = vmatpush1.bf16.msra.mxu0 %v703
    %722 = vmatprep.subr.bf16.mxu0 0
    %723 = vmatpush1.bf16.msra.mxu0 %v704
    %724 = vmatprep.subr.bf16.mxu0 0
    %725 = vmatpush1.bf16.msra.mxu0 %v705
    %726 = vmatprep.subr.bf16.mxu0 0
    %727 = vmatpush1.bf16.msra.mxu0 %v706
    %728 = vmatprep.subr.bf16.mxu0 0
    %729 = vmatpush1.bf16.msra.mxu0 %v707
    %730 = vmatprep.subr.bf16.mxu0 0
    %731 = vmatpush1.bf16.msra.mxu0 %v708
    %732 = vmatprep.subr.bf16.mxu0 0
    %733 = vmatpush1.bf16.msra.mxu0 %v709
    %734 = vmatprep.subr.bf16.mxu0 0
    %735 = vmatpush1.bf16.msra.mxu0 0
    %736 = vmatprep.subr.bf16.mxu0 0
    %737 = vmatpush1.bf16.msra.mxu0 0
    %738 = vmatprep.subr.bf16.mxu0 0
    %739 = vmatpush1.bf16.msra.mxu0 0
    %740 = vmatprep.subr.bf16.mxu0 0
    %741 = vmatpush1.bf16.msra.mxu0 0
    %742 = vmatprep.subr.bf16.mxu0 0
    %743 = vmatpush1.bf16.msra.mxu0 0
    %744 = vmatprep.subr.bf16.mxu0 0
    %745 = vmatpush1.bf16.msra.mxu0 0
    %746 = vmatprep.subr.bf16.mxu0 0
    %747 = vmatpush1.bf16.msra.mxu0 0
    %748 = vmatprep.subr.bf16.mxu0 0
    %749 = vmatpush1.bf16.msra.mxu0 0
    %750 = vmatprep.mubr.bf16.mxu0 0
    %751 = vmatmul.mubr.bf16.gmra.mrb[0].mxu0 %v158
    %v752 = vpop.f32.mrb[0].mxu0
    %v753 = vadd.f32 %v668, %v752
    %v754 = vpop.f32.mrb[0].mxu0
    %v755 = vpop.f32.mrb[0].mxu0
    %v756 = vadd.f32 %v668, %v755
    %v757 = vpop.f32.mrb[0].mxu0
    %758 = vmatprep.mubr.bf16.mxu0 0
    %759 = vmatmul.mubr.bf16.gmra.mrb[0].mxu0 %v159
    %v760 = vpop.f32.mrb[0].mxu0
    %v761 = vadd.f32 %v668, %v760
    %v762 = vpop.f32.mrb[0].mxu0
    %v763 = vpop.f32.mrb[0].mxu0
    %v764 = vadd.f32 %v668, %v763
    %v765 = vpop.f32.mrb[0].mxu0
    %766 = vmatprep.mubr.bf16.mxu0 0
    %767 = vmatmul.mubr.bf16.gmra.mrb[0].mxu0 %v160
    %v768 = vpop.f32.mrb[0].mxu0
    %v769 = vadd.f32 %v668, %v768
    %v770 = vpop.f32.mrb[0].mxu0
    %v771 = vpop.f32.mrb[0].mxu0
    %v772 = vadd.f32 %v668, %v771
    %v773 = vpop.f32.mrb[0].mxu0
    %774 = vmatprep.mubr.bf16.mxu0 0
    %775 = vmatmul.mubr.bf16.gmra.mrb[0].mxu0 %v161
    %v776 = vpop.f32.mrb[0].mxu0
    %v777 = vadd.f32 %v668, %v776
    %v778 = vpop.f32.mrb[0].mxu0
    %v779 = vpop.f32.mrb[0].mxu0
    %v780 = vadd.f32 %v668, %v779
    %v781 = vpop.f32.mrb[0].mxu0
    %782 = vmatprep.mubr.bf16.mxu0 0
    %783 = vmatmul.mubr.bf16.gmra.mrb[0].mxu0 %v162
    %v784 = vpop.f32.mrb[0].mxu0
    %v785 = vadd.f32 %v668, %v784
    %v786 = vpop.f32.mrb[0].mxu0
    %v787 = vpop.f32.mrb[0].mxu0
    %v788 = vadd.f32 %v668, %v787
    %v789 = vpop.f32.mrb[0].mxu0
    %790 = vmatprep.mubr.bf16.mxu0 0
    %791 = vmatmul.mubr.bf16.gmra.mrb[0].mxu0 %v163
    %v792 = vpop.f32.mrb[0].mxu0
    %v793 = vadd.f32 %v668, %v792
    %v794 = vpop.f32.mrb[0].mxu0
    %v795 = vpop.f32.mrb[0].mxu0
    %v796 = vadd.f32 %v668, %v795
    %v797 = vpop.f32.mrb[0].mxu0
    %798 = vmatprep.mubr.bf16.mxu0 0
    %799 = vmatmul.mubr.bf16.gmra.mrb[0].mxu0 %v164
    %v800 = vpop.f32.mrb[0].mxu0
    %v801 = vadd.f32 %v668, %v800
    %v802 = vpop.f32.mrb[0].mxu0
    %v803 = vpop.f32.mrb[0].mxu0
    %v804 = vadd.f32 %v668, %v803
    %v805 = vpop.f32.mrb[0].mxu0
    %806 = vmatprep.mubr.bf16.mxu0 0
    %807 = vmatmul.mubr.bf16.gmra.mrb[0].mxu0 %v165
    %v808 = vpop.f32.mrb[0].mxu0
    %v809 = vadd.f32 %v668, %v808
    %v810 = vpop.f32.mrb[0].mxu0
    %v811 = vpop.f32.mrb[0].mxu0
    %v812 = vadd.f32 %v668, %v811
    %v813 = vpop.f32.mrb[0].mxu0
    %814 = vdwg.mxu0
    %v815 = vpack.c.bf16 %v756, %v753
    %v816 = vpack.c.bf16 %v764, %v761
    %v817 = vpack.c.bf16 %v772, %v769
    %v818 = vpack.c.bf16 %v780, %v777
    %v819 = vpack.c.bf16 %v788, %v785
    %v820 = vpack.c.bf16 %v796, %v793
    %v821 = vpack.c.bf16 %v804, %v801
    %v822 = vpack.c.bf16 %v812, %v809
    %v831 = vunpack.c.l.b16 %v815
    %v832 = vunpack.c.h.b16 %v815
    %v833 = vunpack.c.l.b16 %v816
    %v834 = vunpack.c.h.b16 %v816
    %v835 = vunpack.c.l.b16 %v817
    %v836 = vunpack.c.h.b16 %v817
    %v837 = vunpack.c.l.b16 %v818
    %v838 = vunpack.c.h.b16 %v818
    %v839 = vunpack.c.l.b16 %v819
    %v840 = vunpack.c.h.b16 %v819
    %v841 = vunpack.c.l.b16 %v820
    %v842 = vunpack.c.h.b16 %v820
    %v843 = vunpack.c.l.b16 %v821
    %v844 = vunpack.c.h.b16 %v821
    %v845 = vunpack.c.l.b16 %v822
    %v846 = vunpack.c.h.b16 %v822
    %v847 = vpack.c.b16 %v831, %v831
    %v848 = vpack.c.b16 %v832, %v832
    %v849 = vpack.c.b16 %v833, %v833
    %v850 = vpack.c.b16 %v834, %v834
    %v851 = vpack.c.b16 %v835, %v835
    %v852 = vpack.c.b16 %v836, %v836
    %v853 = vpack.c.b16 %v837, %v837
    %v854 = vpack.c.b16 %v838, %v838
    %v855 = vpack.c.b16 %v839, %v839
    %v856 = vpack.c.b16 %v840, %v840
    %v857 = vpack.c.b16 %v841, %v841
    %v858 = vpack.c.b16 %v842, %v842
    %v859 = vpack.c.b16 %v843, %v843
    %v860 = vpack.c.b16 %v844, %v844
    %v861 = vpack.c.b16 %v845, %v845
    %v862 = vpack.c.b16 %v846, %v846
    %879 = vst [vmem:[#allocation13] sm:$0xf] %v847
    %880 = vst [vmem:[#allocation13 + $0x4] sm:$0xf] %v848
    %881 = vst [vmem:[#allocation13 + $0x8] sm:$0xf] %v849
    %882 = vst [vmem:[#allocation13 + $0xc] sm:$0xf] %v850
    %883 = vst [vmem:[#allocation13 + $0x10] sm:$0xf] %v851
    %884 = vst [vmem:[#allocation13 + $0x14] sm:$0xf] %v852
    %885 = vst [vmem:[#allocation13 + $0x18] sm:$0xf] %v853
    %886 = vst [vmem:[#allocation13 + $0x1c] sm:$0xf] %v854
    %887 = vst [vmem:[#allocation13 + $0x20] sm:$0xf] %v855
    %888 = vst [vmem:[#allocation13 + $0x24] sm:$0xf] %v856
    %889 = vst [vmem:[#allocation13 + $0x28] sm:$0xf] %v857
    %890 = vst [vmem:[#allocation13 + $0x2c] sm:$0xf] %v858
    %891 = vst [vmem:[#allocation13 + $0x30] sm:$0xf] %v859
    %892 = vst [vmem:[#allocation13 + $0x34] sm:$0xf] %v860
    %893 = vst [vmem:[#allocation13 + $0x38] sm:$0xf] %v861
    %894 = vst [vmem:[#allocation13 + $0x3c] sm:$0xf] %v862
    // Predicated region
    $region46: #{tpu_custom_call.1} parent=1 // pred_check
      _
    $region47: #{tpu_custom_call.1} parent=1 // pred_check_branch
      %896 = sbr.rel (0) target = $region49
    $region48: #{tpu_custom_call.1} parent=1 // pred_region
      %s898 = ssub.s32 1024, 1024
      %899 = vsyncadd [#allocation4], %s898
      %s900 = sshll.u32 [#allocation10], 4
      %s901 = int_to_ptr.vmem [resolvable:$true] %s900
      %906 = dma.vmem_to_hbm [thread:$0]  %s901, 1024, %s7, [#allocation4], 64, 64, 4
    $region49: #{tpu_custom_call.1} parent=1 // pred_fallthru
      _
    // Predicated region
    $region50: #{tpu_custom_call.1} parent=1 // pred_check
      _
    $region51: #{tpu_custom_call.1} parent=1 // pred_check_branch
      %908 = sbr.rel (0) target = $region53
    $region52: #{tpu_custom_call.1} parent=1 // pred_region
      %s910 = ssub.s32 1024, 1024
      %911 = vsyncadd [#allocation12], %s910
      %s912 = sshll.u32 [#allocation11], 4
      %s913 = int_to_ptr.vmem [resolvable:$true] %s912
      %918 = dma.vmem_to_hbm [thread:$0]  %s913, 1024, %s8, [#allocation12], 64, 64, 4
    $region53: #{tpu_custom_call.1} parent=1 // pred_fallthru
      _
    // Predicated region
    $region54: #{tpu_custom_call.1} parent=1 // pred_check
      _
    $region55: #{tpu_custom_call.1} parent=1 // pred_check_branch
      %920 = sbr.rel (0) target = $region57
    $region56: #{tpu_custom_call.1} parent=1 // pred_region
      %s922 = ssub.s32 1024, 1024
      %923 = vsyncadd [#allocation12], %s922
      %s924 = sshll.u32 [#allocation13], 4
      %s925 = int_to_ptr.vmem [resolvable:$true] %s924
      %930 = dma.vmem_to_hbm [thread:$0]  %s925, 1024, %s9, [#allocation12], 64, 64, 4
    $region57: #{tpu_custom_call.1} parent=1 // pred_fallthru
      _
    // Predicated region
    $region58: #{tpu_custom_call.1} parent=1 // pred_check
      _
    $region59: #{tpu_custom_call.1} parent=1 // pred_check_branch
      %932 = sbr.rel (0) target = $region61
    $region60: #{tpu_custom_call.1} parent=1 // pred_region
      %933 = dma.done [#allocation4], 1024
    $region61: #{tpu_custom_call.1} parent=1 // pred_fallthru
      _
    // Predicated region
    $region62: #{tpu_custom_call.1} parent=1 // pred_check
      _
    $region63: #{tpu_custom_call.1} parent=1 // pred_check_branch
      %935 = sbr.rel (0) target = $region65
    $region64: #{tpu_custom_call.1} parent=1 // pred_region
      %936 = dma.done [#allocation12], 1024
    $region65: #{tpu_custom_call.1} parent=1 // pred_fallthru
      _
    // Predicated region
    $region66: #{tpu_custom_call.1} parent=1 // pred_check
      _
    $region67: #{tpu_custom_call.1} parent=1 // pred_check_branch
      %938 = sbr.rel (0) target = $region69
    $region68: #{tpu_custom_call.1} parent=1 // pred_region
      %939 = dma.done [#allocation12], 1024
    $region69: #{tpu_custom_call.1} parent=1 // pred_fallthru
      _
    %940 = vsyncpa [#allocation3], 1
    %941 = vsyncpa [#allocation6], 1
    %942 = vsyncpa [#allocation9], 1
    %943 = vsyncpa [#allocation4], 1
    %944 = vsyncpa [#allocation12], 1

</llo_original>
